<compile_context>
chip_gen: v7x
topology: tpu7x:2x2x1
jax: 0.10.0
libtpu: 0.0.40
codegen_flags: <defaults>
</compile_context>

<pallas_src>
import jax
import jax.numpy as jnp
from jax.experimental import pallas as pl
from jax.experimental.pallas import tpu as pltpu


def _round_up(x, m):
    return ((x + m - 1) // m) * m


def _vmem_capacity_bytes():
    """Physical VMEM per TensorCore (128 MiB v5e/v6e, 64 MiB v7x)."""
    try:
        return int(pltpu.get_tpu_info().vmem_capacity_bytes)
    except Exception:
        return 64 << 20  # most conservative across v5e/v6e/v7x


def _tile_options(dim, candidates, align, require_two_tiles):
    """(tile, padded_dim) pairs with bounded padding waste; biggest tile first."""
    dim = max(dim, align)
    min_pad = _round_up(dim, align)
    bound = max(min_pad, dim + dim // 8)  # allow <=12.5% waste or one align quantum
    opts = []
    for c in candidates:
        p = _round_up(dim, c)
        if p > bound:
            continue
        if require_two_tiles and p // c < 2:
            continue
        opts.append((c, p))
    return opts


def _select_tiles(voc, topic, n, x_item, cmp_item, budget):
    """Pick (tv, tn, voc_pad, n_pad, resident_x) under the VMEM buffer budget."""
    tn_opts = _tile_options(n, (2048, 1024, 512, 256, 128), 128, False)
    if not tn_opts:
        tn_opts = [(128, _round_up(max(n, 128), 128))]
    # >=2 V tiles keeps both v7x TensorCores busy on the 'parallel' axis.
    # tv candidates are multiples of 16 so the bf16 scratch stays sublane-packed.
    tv_opts = _tile_options(voc, (1024, 512, 256, 128, 64, 32, 16), 16, True)
    if not tv_opts:  # tiny vocab: a single V tile is unavoidable
        tv_opts = [(16, _round_up(max(voc, 16), 16))]

    best = None
    for tv, vp in tv_opts:
        for tn, np_ in tn_opts:
            resident = 2 * topic * np_ * x_item <= budget // 3
            fp = (2 * tv * tn * 4                 # out tiles (f32), double-buffered
                  + 2 * tv * topic * 4            # w tiles (f32), double-buffered
                  + tv * topic * cmp_item         # cached softmax(w) scratch
                  + 2 * topic * 4                 # lse
                  + (2 * topic * np_ * x_item if resident
                     else 2 * topic * tn * x_item))
            if fp > budget:
                continue
            key = (tv * tn, tn, tv)
            if best is None or key > best[0]:
                best = (key, tv, tn, vp, np_, resident)
    if best is None:  # fall back to the smallest tiles, tiled x (always tiny)
        tv, vp = tv_opts[-1]
        tn, np_ = tn_opts[-1]
        return tv, tn, vp, np_, False
    _, tv, tn, vp, np_, resident = best
    return tv, tn, vp, np_, resident


def _make_kernel_tiled_x():
    def kernel(lse_ref, w_ref, x_ref, o_ref, e_ref):
        # e_ref caches softmax(w) for the current V tile.  This is correct ONLY
        # because the N axis (grid axis 1) is the innermost, serial ('arbitrary')
        # axis and VMEM scratch persists across grid steps.  Do not reorder.
        @pl.when(pl.program_id(1) == 0)
        def _():
            w = w_ref[...].astype(jnp.float32)
            e_ref[...] = jnp.exp(w - lse_ref[...]).astype(e_ref.dtype)

        o_ref[...] = jnp.dot(
            e_ref[...], x_ref[...], preferred_element_type=jnp.float32
        ).astype(o_ref.dtype)

    return kernel


def _make_kernel_resident_x(tn):
    def kernel(lse_ref, w_ref, x_ref, o_ref, e_ref):
        # Same cached-softmax trick; see comment in _make_kernel_tiled_x.
        @pl.when(pl.program_id(1) == 0)
        def _():
            w = w_ref[...].astype(jnp.float32)
            e_ref[...] = jnp.exp(w - lse_ref[...]).astype(e_ref.dtype)

        # x is fully VMEM-resident (DMA'd once); slice the lane-aligned N window.
        start = pl.multiple_of(pl.program_id(1) * tn, tn)
        x = x_ref[:, pl.ds(start, tn)]
        o_ref[...] = jnp.dot(
            e_ref[...], x, preferred_element_type=jnp.float32
        ).astype(o_ref.dtype)

    return kernel


def conv1d_softmax(w, x, *, compute_dtype=jnp.bfloat16):
    """softmax(w, axis=0) @ x.reshape(-1, x.shape[-1]).  Output is float32."""
    voc_size, topic_size = w.shape
    x2d = x.reshape(-1, x.shape[-1])  # (topic_size, N)
    assert x2d.shape[0] == topic_size, "x must flatten to (topic_size, N)"
    n = x2d.shape[1]

    compute_dtype = jnp.dtype(compute_dtype)
    x_item = compute_dtype.itemsize

    # Per-generation VMEM budget / scoped limit (v5e/v6e: 128 MiB, v7x: 64 MiB).
    phys = _vmem_capacity_bytes()
    budget = min(int(phys * 0.60), 64 << 20)
    vmem_limit = min(int(phys * 0.80), 96 << 20)

    tv, tn, voc_pad, n_pad, resident = _select_tiles(
        voc_size, topic_size, n, x_item, x_item, budget)

    # --- Pass 1: global per-column logsumexp over the FULL (unpadded) voc axis.
    w32 = w.astype(jnp.float32)
    m = jnp.max(w32, axis=0, keepdims=True)
    lse = m + jnp.log(jnp.sum(jnp.exp(w32 - m), axis=0, keepdims=True))  # (1, T)

    # --- Pad to sublane/lane-dense tiles; padded rows/cols are sliced off later.
    w_in = w32
    if voc_pad != voc_size:
        w_in = jnp.pad(w_in, ((0, voc_pad - voc_size), (0, 0)))
    x_in = x2d.astype(compute_dtype)  # cast once here, not per grid step
    if n_pad != n:
        x_in = jnp.pad(x_in, ((0, 0), (0, n_pad - n)))

    grid = (voc_pad // tv, n_pad // tn)

    if resident:
        kernel = _make_kernel_resident_x(tn)
        x_spec = pl.BlockSpec((topic_size, n_pad), lambda i, j: (0, 0))
        x_reads = topic_size * n_pad * x_item
    else:
        kernel = _make_kernel_tiled_x()
        x_spec = pl.BlockSpec((topic_size, tn), lambda i, j: (0, j))
        x_reads = grid[0] * topic_size * n_pad * x_item  # re-read per V tile

    cost = pl.CostEstimate(
        flops=2 * voc_pad * topic_size * n_pad,
        transcendentals=voc_pad * topic_size,
        bytes_accessed=(voc_pad * topic_size * 4 + x_reads + voc_pad * n_pad * 4),
    )

    out = pl.pallas_call(
        kernel,
        out_shape=jax.ShapeDtypeStruct((voc_pad, n_pad), jnp.float32),
        grid_spec=pltpu.PrefetchScalarGridSpec(
            num_scalar_prefetch=0,
            grid=grid,
            in_specs=[
                pl.BlockSpec((1, topic_size), lambda i, j: (0, 0)),    # lse (resident)
                pl.BlockSpec((tv, topic_size), lambda i, j: (i, 0)),   # w V-tile
                x_spec,                                                # x (tiled or resident)
            ],
            out_specs=pl.BlockSpec((tv, tn), lambda i, j: (i, j)),
            scratch_shapes=[pltpu.VMEM((tv, topic_size), compute_dtype)],
        ),
        compiler_params=pltpu.CompilerParams(
            # V axis 'parallel' (v7x megacore, >=2 tiles enforced in tile choice);
            # N axis MUST stay innermost + serial ('arbitrary') so the cached
            # exp(w - lse) scratch written at j == 0 is valid for all later j.
            dimension_semantics=("parallel", "arbitrary"),
            vmem_limit_bytes=vmem_limit,
        ),
        cost_estimate=cost,
    )(lse, w_in, x_in)

    return out[:voc_size, :n]


def reference(w, x):
    w_sm = jax.nn.softmax(w.astype(jnp.float32), axis=0)
    return w_sm @ x.reshape(-1, x.shape[-1]).astype(jnp.float32)


if __name__ == "__main__":
    key = jax.random.PRNGKey(0)
    kw, kx, kw2, kx2 = jax.random.split(key, 4)

    # --- Toy shapes mirroring the module (padded-N, 2x1 grid, resident x) ------
    voc, topic, n = 64, 16, 32
    w = (0.02 * jax.random.normal(kw, (voc, topic))).astype(jnp.float32)
    x = jax.random.normal(kx, (topic, n), dtype=jnp.float32)
    ref = reference(w, x)

    out_f32 = conv1d_softmax(w, x, compute_dtype=jnp.float32)
    jax.block_until_ready(out_f32)
    assert out_f32.shape == ref.shape
    assert jnp.allclose(out_f32, ref, atol=1e-5, rtol=1e-5), "f32 toy mismatch"

    out_bf16 = conv1d_softmax(w, x)  # default bf16 MXU feed, f32 accumulation
    jax.block_until_ready(out_bf16)
    assert jnp.allclose(out_bf16, ref, atol=1e-3, rtol=2e-2), "bf16 toy mismatch"

    # --- Non-divisible shapes: exercises V/N padding, multi-tile grid ----------
    voc, topic, n = 1000, 96, 384
    w2 = (0.02 * jax.random.normal(kw2, (voc, topic))).astype(jnp.float32)
    x2 = jax.random.normal(kx2, (topic, n), dtype=jnp.float32)
    ref2 = reference(w2, x2)

    out2_f32 = conv1d_softmax(w2, x2, compute_dtype=jnp.float32)
    jax.block_until_ready(out2_f32)
    assert out2_f32.shape == ref2.shape
    assert jnp.allclose(out2_f32, ref2, atol=1e-5, rtol=1e-5), "f32 padded mismatch"

    out2_bf16 = conv1d_softmax(w2, x2)
    jax.block_until_ready(out2_bf16)
    assert jnp.allclose(out2_bf16, ref2, atol=1e-3, rtol=2e-2), "bf16 padded mismatch"

    print("KERNEL_OK")
</pallas_src>

<mosaic_0001>
module attributes {stable_mosaic.version = 11 : i64} {
  func.func @kernel(%arg0: i32, %arg1: i32, %arg2: memref<1x16xf32, #tpu.memory_space<vmem>>, %arg3: memref<32x16xf32, #tpu.memory_space<vmem>>, %arg4: memref<16x128xf32, #tpu.memory_space<vmem>>, %arg5: memref<32x128xf32, #tpu.memory_space<vmem>>, %arg6: memref<32x16xf32, #tpu.memory_space<vmem>>) attributes {dimension_semantics = [#tpu.dimension_semantics<parallel>, #tpu.dimension_semantics<arbitrary>], iteration_bounds = array<i64: 2, 1>, scalar_prefetch = 0 : i64, scratch_operands = 1 : i64, tpu.core_type = #tpu.core_type<tc>, window_params = [{pipeline_mode = #tpu.pipeline_mode<synchronous>, transform_indices = @transform_0, window_bounds = array<i64: 1, 16>}, {transform_indices = @transform_1, window_bounds = array<i64: 32, 16>}, {pipeline_mode = #tpu.pipeline_mode<synchronous>, transform_indices = @transform_2, window_bounds = array<i64: 16, 128>}, {transform_indices = @transform_3, window_bounds = array<i64: 32, 128>}]} {
    %c0_i32 = arith.constant 0 : i32
    %0 = arith.cmpi eq, %arg1, %c0_i32 : i32
    %1 = arith.extui %0 : i1 to i32
    %c0_i32_0 = arith.constant 0 : i32
    %2 = arith.cmpi ne, %1, %c0_i32_0 : i32
    scf.if %2 {
      %c0_5 = arith.constant 0 : index
      %c0_6 = arith.constant 0 : index
      %10 = vector.load %arg3[%c0_5, %c0_6] : memref<32x16xf32, #tpu.memory_space<vmem>>, vector<32x16xf32>
      %c0_7 = arith.constant 0 : index
      %c0_8 = arith.constant 0 : index
      %11 = vector.load %arg2[%c0_7, %c0_8] : memref<1x16xf32, #tpu.memory_space<vmem>>, vector<1x16xf32>
      %12 = vector.broadcast %11 : vector<1x16xf32> to vector<32x16xf32>
      %13 = arith.subf %10, %12 : vector<32x16xf32>
      %14 = math.exp %13 : vector<32x16xf32>
      %c0_9 = arith.constant 0 : index
      %c0_10 = arith.constant 0 : index
      %15 = vector.load %arg6[%c0_9, %c0_10] : memref<32x16xf32, #tpu.memory_space<vmem>>, vector<32x16xf32>
      tpu.vector_store %arg6[%c0_9, %c0_10], %14 {strides = array<i32>} : memref<32x16xf32, #tpu.memory_space<vmem>>, vector<32x16xf32>,
    } else {
    }
    %c128_i32 = arith.constant 128 : i32
    %3 = arith.muli %arg1, %c128_i32 : i32
    %4 = tpu.assume_multiple %3, 128 : i32
    %c0 = arith.constant 0 : index
    %5 = arith.index_cast %4 : i32 to index
    %6 = vector.load %arg4[%c0, %5] : memref<16x128xf32, #tpu.memory_space<vmem>>, vector<16x128xf32>
    %c0_1 = arith.constant 0 : index
    %c0_2 = arith.constant 0 : index
    %7 = vector.load %arg6[%c0_1, %c0_2] : memref<32x16xf32, #tpu.memory_space<vmem>>, vector<32x16xf32>
    %cst = arith.constant dense<0.000000e+00> : vector<32x128xf32>
    %8 = tpu.matmul %7, %6, %cst {dimension_numbers = #tpu.dot_dimension_numbers<[1], [0], [0], [1], [0, 0, 1, 1], [], []>} : vector<32x16xf32>, vector<16x128xf32>, vector<32x128xf32> -> vector<32x128xf32>
    %c0_3 = arith.constant 0 : index
    %c0_4 = arith.constant 0 : index
    %9 = vector.load %arg5[%c0_3, %c0_4] : memref<32x128xf32, #tpu.memory_space<vmem>>, vector<32x128xf32>
    tpu.vector_store %arg5[%c0_3, %c0_4], %8 {strides = array<i32>} : memref<32x128xf32, #tpu.memory_space<vmem>>, vector<32x128xf32>,
    return
  }
  func.func @transform_0(%arg0: i32, %arg1: i32) -> (i32, i32) {
    %c0_i32 = arith.constant 0 : i32
    %c0_i32_0 = arith.constant 0 : i32
    %c0_i32_1 = arith.constant 0 : i32
    return %c0_i32, %c0_i32_0 : i32, i32
  }
  func.func @transform_1(%arg0: i32, %arg1: i32) -> (i32, i32) {
    %c0_i32 = arith.constant 0 : i32
    %c0_i32_0 = arith.constant 0 : i32
    return %arg0, %c0_i32 : i32, i32
  }
  func.func @transform_2(%arg0: i32, %arg1: i32) -> (i32, i32) {
    %c0_i32 = arith.constant 0 : i32
    %c0_i32_0 = arith.constant 0 : i32
    %c0_i32_1 = arith.constant 0 : i32
    return %c0_i32, %c0_i32_0 : i32, i32
  }
  func.func @transform_3(%arg0: i32, %arg1: i32) -> (i32, i32) {
    %c0_i32 = arith.constant 0 : i32
    return %arg0, %arg1 : i32, i32
  }
}

</mosaic_0001>

<llo_original>
// kernel: tpu_custom_call.1
$region0: #{tpu_custom_call.1}
  #allocation0 [shape = 'u32[]', space=smem, size = 0x4, offset = 0x4, fixed_abs, tag = 'smem constant byte address 0x4 - core index']
  #allocation1 [shape = 'u32[144,128]{1,0:T(1,128)}', space=vmem, size = 0x12000, scoped, tag = 'internal scratch']
  #allocation2 [shape = 'f32[32,16]{1,0:T(8,128)}', space=vmem, size = 0x4000, scoped, tag = 'scratch operand']
  %s0 = inlined_call_operand.vmem [shape: f32[1,16], index: 0, kind: input, shape index: {}]
  %s1 = inlined_call_operand.vmem [shape: f32[64,16], index: 1, kind: input, shape index: {}]
  %s2 = inlined_call_operand.vmem [shape: f32[16,128], index: 2, kind: input, shape index: {}]
  %s3 = inlined_call_operand.hbm [shape: f32[64,128], index: 3, kind: output, shape index: {}]
  %s4 = sld [smem:[#allocation0]]
  $region49: #{tpu_custom_call.1} parent=0
    _
  %s6 = ssub.s32 1, %s4
  %s7 = scalar_select 0, %s6, %s4
  $region1: #{tpu_custom_call.1} parent=0
    #allocation3 [shape = 'u8[32768]{0}', space=vmem, size = 0x8000, scoped, tag = 'output window, operand 0']
    #allocation4 [shape = 's32[2]{0}', space=sflag, size = 0x8, scoped, tag = 'scoped memory for tpu_custom_call.1']
    %8 = vsyncpa [#allocation4], 0
    %s9 = scalar_lea.sflag [#allocation4], 1
    %10 = vsyncpa %s9, 0
    loop: start=0, step=1, limit=4
    $region2: #{tpu_custom_call.1} parent=1 // loop_pre_header
      _
    $region3: #{tpu_custom_call.1} parent=1 // loop_header
      %s12 = sphi 0, %s16
      %p13 = scmp.ge.s32.totalorder %s12, 4
      %s19 = sphi 0, %s31
      %s20 = sphi 0, %s27
      %s21 = sphi 0, %s19
      %s22 = sphi 0, %s20
      %s23 = sphi 0, %s21
      %s24 = sphi 0, %s22
      %s32 = sphi 0, %s32
      %s34 = sphi 0, %s32
      %s35 = sphi 0, %s34
      %s49 = sphi 0, %s35
      %s55 = sphi 0, %s57
      %s58 = sphi 0, %s55
      %s59 = sphi 0, %s58
      %s75 = sphi 0, %s59
      %s79 = sphi 0, %s79
      %s81 = sphi 0, %s79
      %s82 = sphi 0, %s81
      %s96 = sphi 0, %s82
      %s104 = sphi 0, %s106
      %s107 = sphi 0, %s104
      %s108 = sphi 0, %s107
      %s124 = sphi 0, %s108
    $region4: #{tpu_custom_call.1} parent=1 // loop_header_branch
      %15 = sbr.rel (%p13) target = $region8
    $region5: #{tpu_custom_call.1} parent=1 // loop_body
      %s17 = ssub.s32 %s12, 1
      %s18 = ssub.s32 %s12, 2
      %s25 = sadd.s32 1, %s20
      %p26 = scmp.ge.s32.totalorder %s25, 1
      %s27 = scalar_select %p26, 0, %s25
      %s28 = sadd.s32 1, %s19
      %s29 = scalar_select %p26, %s28, %s19
      %p30 = scmp.ge.s32.totalorder %s29, 2
      %s31 = scalar_select %p30, 0, %s29
      %s33 = sadd.s32 %s32, 1
      %p36 = scmp.eq.s32.totalorder %s12, 1
      %p37 = scmp.ne.s32.totalorder %s32, %s34
      %p38 = scmp.eq.s32.totalorder %s12, 0
      %p39 = por %p37, %p38
      %p40 = scmp.ne.s32.totalorder %s32, %s34
      %p41 = scmp.eq.s32.totalorder %s17, 1
      %p42 = por %p40, %p41
      %p43 = scmp.ne.s32.totalorder %s34, %s35
      %p44 = scmp.eq.s32.totalorder %s17, 0
      %p45 = por %p43, %p44
      %p46 = scmp.ne.s32.totalorder %s34, %s35
      %p47 = scmp.eq.s32.totalorder %s18, 1
      %p48 = por %p46, %p47
      %p50 = scmp.ne.s32.totalorder %s35, %s49
      %p51 = scmp.eq.s32.totalorder %s18, 0
      %p52 = por %p50, %p51
      %s53 = ssub.s32 %s19, %s31
      %p54 = scmp.eq.s32.totalorder %s53, 0
      %s56 = sadd.s32 %s55, 1
      %s57 = scalar_select %p54, %s55, %s56
      %p60 = pneg %p54
      %p61 = scmp.eq.s32.totalorder %s12, 1
      %p62 = por %p60, %p61
      %p63 = scmp.ne.s32.totalorder %s55, %s58
      %p64 = scmp.eq.s32.totalorder %s12, 0
      %p65 = por %p63, %p64
      %p66 = scmp.ne.s32.totalorder %s55, %s58
      %p67 = scmp.eq.s32.totalorder %s17, 1
      %p68 = por %p66, %p67
      %p69 = scmp.ne.s32.totalorder %s58, %s59
      %p70 = scmp.eq.s32.totalorder %s17, 0
      %p71 = por %p69, %p70
      %p72 = scmp.ne.s32.totalorder %s58, %s59
      %p73 = scmp.eq.s32.totalorder %s18, 1
      %p74 = por %p72, %p73
      %p76 = scmp.ne.s32.totalorder %s59, %s75
      %p77 = scmp.eq.s32.totalorder %s18, 0
      %p78 = por %p76, %p77
      %s80 = sadd.s32 %s79, 1
      %p83 = scmp.eq.s32.totalorder %s12, 1
      %p84 = scmp.ne.s32.totalorder %s79, %s81
      %p85 = scmp.eq.s32.totalorder %s12, 0
      %p86 = por %p84, %p85
      %p87 = scmp.ne.s32.totalorder %s79, %s81
      %p88 = scmp.eq.s32.totalorder %s17, 1
      %p89 = por %p87, %p88
      %p90 = scmp.ne.s32.totalorder %s81, %s82
      %p91 = scmp.eq.s32.totalorder %s17, 0
      %p92 = por %p90, %p91
      %p93 = scmp.ne.s32.totalorder %s81, %s82
      %p94 = scmp.eq.s32.totalorder %s18, 1
      %p95 = por %p93, %p94
      %p97 = scmp.ne.s32.totalorder %s82, %s96
      %p98 = scmp.eq.s32.totalorder %s18, 0
      %p99 = por %p97, %p98
      %s100 = ssub.s32 %s19, %s31
      %s101 = ssub.s32 %s20, %s27
      %s102 = sor.u32 %s100, %s101
      %p103 = scmp.eq.s32.totalorder %s102, 0
      %s105 = sadd.s32 %s104, 1
      %s106 = scalar_select %p103, %s104, %s105
      %p109 = pneg %p103
      %p110 = scmp.eq.s32.totalorder %s12, 1
      %p111 = por %p109, %p110
      %p112 = scmp.ne.s32.totalorder %s104, %s107
      %p113 = scmp.eq.s32.totalorder %s12, 0
      %p114 = por %p112, %p113
      %p115 = scmp.ne.s32.totalorder %s104, %s107
      %p116 = scmp.eq.s32.totalorder %s17, 1
      %p117 = por %p115, %p116
      %p118 = scmp.ne.s32.totalorder %s107, %s108
      %p119 = scmp.eq.s32.totalorder %s17, 0
      %p120 = por %p118, %p119
      %p121 = scmp.ne.s32.totalorder %s107, %s108
      %p122 = scmp.eq.s32.totalorder %s18, 1
      %p123 = por %p121, %p122
      %p125 = scmp.ne.s32.totalorder %s108, %s124
      %p126 = scmp.eq.s32.totalorder %s18, 0
      %p127 = por %p125, %p126
      %p128 = scmp.le.s32.totalorder 1, %s12
      %p129 = scmp.lt.s32.totalorder %s12, 3
      %p130 = pnand %p128, %p129
      %p131 = pneg %p130
      // Predicated region
      $region9: #{tpu_custom_call.1} parent=5 // pred_check
        _
      $region10: #{tpu_custom_call.1} parent=5 // pred_check_branch
        %133 = sbr.rel (%p130) target = $region12
      $region11: #{tpu_custom_call.1} parent=5 // pred_region
        %s134 = ssub.s32 %s12, 1
        // Predicated region
        $region13: #{tpu_custom_call.1} parent=11 // pred_check
          %p135 = pneg %p45
        $region14: #{tpu_custom_call.1} parent=11 // pred_check_branch
          %137 = sbr.rel (%p135) target = $region16
        $region15: #{tpu_custom_call.1} parent=11 // pred_region
          _
        $region16: #{tpu_custom_call.1} parent=11 // pred_fallthru
          _
        // Predicated region
        $region17: #{tpu_custom_call.1} parent=11 // pred_check
          %p138 = pneg %p92
        $region18: #{tpu_custom_call.1} parent=11 // pred_check_branch
          %140 = sbr.rel (%p138) target = $region20
        $region19: #{tpu_custom_call.1} parent=11 // pred_region
          _
        $region20: #{tpu_custom_call.1} parent=11 // pred_fallthru
          _
      $region12: #{tpu_custom_call.1} parent=5 // pred_fallthru
        _
      %p141 = scmp.lt.s32.totalorder %s12, 2
      // Predicated region
      $region21: #{tpu_custom_call.1} parent=5 // pred_check
        %p142 = pneg %p141
      $region22: #{tpu_custom_call.1} parent=5 // pred_check_branch
        %144 = sbr.rel (%p142) target = $region24
      $region23: #{tpu_custom_call.1} parent=5 // pred_region
        // Predicated region
        $region25: #{tpu_custom_call.1} parent=23 // pred_check
          %p145 = pneg %p65
        $region26: #{tpu_custom_call.1} parent=23 // pred_check_branch
          %147 = sbr.rel (%p145) target = $region28
        $region27: #{tpu_custom_call.1} parent=23 // pred_region
          %s148 = smul.u32 4, %s19
          %p149 = scmp.lt.s32.totalorder %s148, 7
          %s150 = scalar_select %p149, %s148, 7
          %s151 = smul.addr %s150, 8
          %s152 = scalar_lea.vmem %s1, %s151
          %s153 = smul.u32 4, %s19
        $region28: #{tpu_custom_call.1} parent=23 // pred_fallthru
          _
      $region24: #{tpu_custom_call.1} parent=5 // pred_fallthru
        _
      %p154 = scmp.le.s32.totalorder 1, %s12
      %p155 = scmp.lt.s32.totalorder %s12, 3
      %p156 = pnand %p154, %p155
      %p157 = pneg %p156
      // Predicated region
      $region29: #{tpu_custom_call.1} parent=5 // pred_check
        _
      $region30: #{tpu_custom_call.1} parent=5 // pred_check_branch
        %159 = sbr.rel (%p156) target = $region32
      $region31: #{tpu_custom_call.1} parent=5 // pred_region
        %s160 = ssub.s32 %s12, 1
        %p161 = pneg %p45
        %p162 = pneg %p42
        %s163 = smul.u32 4, %s21
        %p164 = scmp.lt.s32.totalorder %s163, 7
        %s165 = scalar_select %p164, %s163, 7
        %s166 = smul.addr %s165, 8
        %s167 = scalar_lea.vmem %s1, %s166
        %p168 = pneg %p71
        %p169 = pneg %p68
        %p170 = pneg %p92
        %p171 = pneg %p89
        %p172 = pneg %p120
        %p173 = pneg %p117
        %s174 = sand.u32 %s107, 1
        %s175 = scalar_lea.sflag [#allocation4], %s174
        %s176 = sand.u32 %s107, 1
        %s177 = smul.addr %s176, 32
        %s178 = scalar_lea.vmem [#allocation3], %s177
        %s179 = smul.u32 4, %s21
        %p180 = scmp.lt.s32.totalorder %s179, 7
        %s181 = scalar_select %p180, %s179, 7
        %s182 = smul.addr %s181, 8
        %s183 = scalar_lea.vmem %s1, %s182
        %s184 = smul.u32 4, %s21
        %s185 = smul.u32 4, %s21
        %p186 = scmp.eq.s32.totalorder %s22, 0
        // Predicated region
        $region33: #{tpu_custom_call.1} parent=31 // pred_check
          %p187 = pneg %p186
        $region34: #{tpu_custom_call.1} parent=31 // pred_check_branch
          %189 = sbr.rel (%p187) target = $region36
        $region35: #{tpu_custom_call.1} parent=31 // pred_region
          %v190 = vld [vmem:[%s183] sm:$0xff]
          %v191 = vld [vmem:[%s183 + $0x8] sm:$0xff]
          %v192 = vld [vmem:[%s183 + $0x10] sm:$0xff]
          %v193 = vld [vmem:[%s183 + $0x18] sm:$0xff]
          %v194 = vld [vmem:[%s0] sm:$0x1]
          %v196 = vlaneseq
          %v197 = vshrl.u32 %v196, 7
          %v198 = vsub.s32 0, %v197
          %v199 = vrot.slane %v194, %v198
          %v201 = vsub.f32 %v190, %v199
          %v202 = vsub.f32 %v191, %v199
          %v203 = vsub.f32 %v192, %v199
          %v204 = vsub.f32 %v193, %v199
          %v205 = vmul.f32 %v201, 1.442695
          %v206 = vpow.pop %v205
          %v207 = vmul.f32 %v202, 1.442695
          %v208 = vpow.pop %v207
          %v209 = vmul.f32 %v203, 1.442695
          %v210 = vpow.pop %v209
          %v211 = vmul.f32 %v204, 1.442695
          %v212 = vpow.pop %v211
          %vm213 = vcmask 130048
          %214 = vst.msk [vmem:[#allocation2] sm:$0xff] %vm213, %v206
          %215 = vst.msk [vmem:[#allocation2 + $0x8] sm:$0xff] %vm213, %v208
          %216 = vst.msk [vmem:[#allocation2 + $0x10] sm:$0xff] %vm213, %v210
          %217 = vst.msk [vmem:[#allocation2 + $0x18] sm:$0xff] %vm213, %v212
        $region36: #{tpu_custom_call.1} parent=31 // pred_fallthru
          _
        %s218 = smul.u32 %s22, 128
        %s219 = sshra.s32 %s218, 7
        %s220 = sand.u32 %s218, 127
        %s221 = scalar_lea.vmem %s2, %s219
        %v222 = vld [vmem:[%s221] sm:$0xff]
        %v223 = vld [vmem:[%s221 + $0x8] sm:$0xff]
        %v224 = vld [vmem:[#allocation2] sm:$0xff]
        %v225 = vld [vmem:[#allocation2 + $0x8] sm:$0xff]
        %v226 = vld [vmem:[#allocation2 + $0x10] sm:$0xff]
        %v227 = vld [vmem:[#allocation2 + $0x18] sm:$0xff]
        %vm228 = vcmask 130048
        %v230 = vsel %vm228, %v224, 0
        %v233 = vsel %vm228, %v225, 0
        %v236 = vsel %vm228, %v226, 0
        %v239 = vsel %vm228, %v227, 0
        %241 = vmatprep.subr.mxu0 0.0
        %242 = vmatpush1.msra.mxu0 %v222
        %243 = vmatprep.subr.mxu0 0.0
        %244 = vmatpush1.msra.mxu0 %v223
        %245 = vmatprep.subr.mxu0 0.0
        %246 = vmatpush1.msra.mxu0 0.0
        %247 = vmatprep.subr.mxu0 0.0
        %248 = vmatpush1.msra.mxu0 0.0
        %249 = vmatprep.subr.mxu0 0.0
        %250 = vmatpush1.msra.mxu0 0.0
        %251 = vmatprep.subr.mxu0 0.0
        %252 = vmatpush1.msra.mxu0 0.0
        %253 = vmatprep.subr.mxu0 0.0
        %254 = vmatpush1.msra.mxu0 0.0
        %255 = vmatprep.subr.mxu0 0.0
        %256 = vmatpush1.msra.mxu0 0.0
        %257 = vmatprep.subr.mxu0 0.0
        %258 = vmatpush1.msra.mxu0 0.0
        %259 = vmatprep.subr.mxu0 0.0
        %260 = vmatpush1.msra.mxu0 0.0
        %261 = vmatprep.subr.mxu0 0.0
        %262 = vmatpush1.msra.mxu0 0.0
        %263 = vmatprep.subr.mxu0 0.0
        %264 = vmatpush1.msra.mxu0 0.0
        %265 = vmatprep.subr.mxu0 0.0
        %266 = vmatpush1.msra.mxu0 0.0
        %267 = vmatprep.subr.mxu0 0.0
        %268 = vmatpush1.msra.mxu0 0.0
        %269 = vmatprep.subr.mxu0 0.0
        %270 = vmatpush1.msra.mxu0 0.0
        %271 = vmatprep.subr.mxu0 0.0
        %272 = vmatpush1.msra.mxu0 0.0
        %273 = vmatprep.subr.mxu0 0.0
        %274 = vmatpush1.msra.mxu0 0.0
        %275 = vmatprep.subr.mxu0 0.0
        %276 = vmatpush1.msra.mxu0 0.0
        %277 = vmatprep.subr.mxu0 0.0
        %278 = vmatpush1.msra.mxu0 0.0
        %279 = vmatprep.subr.mxu0 0.0
        %280 = vmatpush1.msra.mxu0 0.0
        %281 = vmatprep.subr.mxu0 0.0
        %282 = vmatpush1.msra.mxu0 0.0
        %283 = vmatprep.subr.mxu0 0.0
        %284 = vmatpush1.msra.mxu0 0.0
        %285 = vmatprep.subr.mxu0 0.0
        %286 = vmatpush1.msra.mxu0 0.0
        %287 = vmatprep.subr.mxu0 0.0
        %288 = vmatpush1.msra.mxu0 0.0
        %289 = vmatprep.subr.mxu0 0.0
        %290 = vmatpush1.msra.mxu0 0.0
        %291 = vmatprep.subr.mxu0 0.0
        %292 = vmatpush1.msra.mxu0 0.0
        %293 = vmatprep.subr.mxu0 0.0
        %294 = vmatpush1.msra.mxu0 0.0
        %295 = vmatprep.subr.mxu0 0.0
        %296 = vmatpush1.msra.mxu0 0.0
        %297 = vmatprep.subr.mxu0 0.0
        %298 = vmatpush1.msra.mxu0 0.0
        %299 = vmatprep.subr.mxu0 0.0
        %300 = vmatpush1.msra.mxu0 0.0
        %301 = vmatprep.subr.mxu0 0.0
        %302 = vmatpush1.msra.mxu0 0.0
        %303 = vmatprep.subr.mxu0 0.0
        %304 = vmatpush1.msra.mxu0 0.0
        %305 = vmatprep.mubr.f32.mxu0 0.0
        %306 = vmatmul.mubr.f32.gmra.mrb[0].mxu0 %v230
        %v307 = vpop.f32.mrb[0].mxu0
        %v308 = vadd.f32 0.0, %v307
        %v309 = vpop.f32.mrb[0].mxu0
        %310 = vmatprep.mubr.f32.mxu0 0.0
        %311 = vmatmul.mubr.f32.gmra.mrb[0].mxu0 %v233
        %v312 = vpop.f32.mrb[0].mxu0
        %v313 = vadd.f32 0.0, %v312
        %v314 = vpop.f32.mrb[0].mxu0
        %315 = vmatprep.mubr.f32.mxu0 0.0
        %316 = vmatmul.mubr.f32.gmra.mrb[0].mxu0 %v236
        %v317 = vpop.f32.mrb[0].mxu0
        %v318 = vadd.f32 0.0, %v317
        %v319 = vpop.f32.mrb[0].mxu0
        %320 = vmatprep.mubr.f32.mxu0 0.0
        %321 = vmatmul.mubr.f32.gmra.mrb[0].mxu0 %v239
        %v322 = vpop.f32.mrb[0].mxu0
        %v323 = vadd.f32 0.0, %v322
        %v324 = vpop.f32.mrb[0].mxu0
        %325 = vdwg.mxu0
        %326 = vst [vmem:[%s178] sm:$0xff] %v308
        %327 = vst [vmem:[%s178 + $0x8] sm:$0xff] %v313
        %328 = vst [vmem:[%s178 + $0x10] sm:$0xff] %v318
        %329 = vst [vmem:[%s178 + $0x18] sm:$0xff] %v323
        %s330 = sand.u32 %s107, 1
        %s331 = scalar_lea.sflag [#allocation4], %s330
        %s332 = sand.u32 %s107, 1
        %s333 = smul.addr %s332, 32
        %s334 = scalar_lea.vmem [#allocation3], %s333
        // Predicated region
        $region37: #{tpu_custom_call.1} parent=31 // pred_check
          %p335 = pneg %p117
        $region38: #{tpu_custom_call.1} parent=31 // pred_check_branch
          %337 = sbr.rel (%p335) target = $region40
        $region39: #{tpu_custom_call.1} parent=31 // pred_region
          %s338 = smul.u32 4, %s21
          %s340 = ssub.s32 512, 512
          %341 = vsyncadd %s331, %s340
          %s342 = sadd.s32 %s22, %s338
          %s343 = smul.addr %s342, 128
          %s344 = scalar_lea.hbm %s3, %s343
          %s345 = sshll.u32 %s334, 4
          %s346 = int_to_ptr.vmem [resolvable:$true] %s345
          %351 = dma.vmem_to_hbm [thread:$0]  %s346, 512, %s344, %s331, 128, 128, 8
        $region40: #{tpu_custom_call.1} parent=31 // pred_fallthru
          _
      $region32: #{tpu_custom_call.1} parent=5 // pred_fallthru
        _
      %p352 = scmp.le.s32.totalorder 2, %s12
      // Predicated region
      $region41: #{tpu_custom_call.1} parent=5 // pred_check
        %p353 = pneg %p352
      $region42: #{tpu_custom_call.1} parent=5 // pred_check_branch
        %355 = sbr.rel (%p353) target = $region44
      $region43: #{tpu_custom_call.1} parent=5 // pred_region
        %s356 = ssub.s32 %s12, 2
        // Predicated region
        $region45: #{tpu_custom_call.1} parent=43 // pred_check
          %p357 = pneg %p123
        $region46: #{tpu_custom_call.1} parent=43 // pred_check_branch
          %359 = sbr.rel (%p357) target = $region48
        $region47: #{tpu_custom_call.1} parent=43 // pred_region
          %s360 = sand.u32 %s108, 1
          %s361 = scalar_lea.sflag [#allocation4], %s360
          %s362 = sand.u32 %s108, 1
          %s363 = smul.addr %s362, 32
          %s364 = scalar_lea.vmem [#allocation3], %s363
          %365 = dma.done %s361, 512
        $region48: #{tpu_custom_call.1} parent=43 // pred_fallthru
          _
      $region44: #{tpu_custom_call.1} parent=5 // pred_fallthru
        _
    $region6: #{tpu_custom_call.1} parent=1 // loop_footer
      %s16 = sadd.s32 1, %s12
    $region7: #{tpu_custom_call.1} parent=1 // loop_footer_branch
      %11 = sbr.rel target = $region3
    $region8: #{tpu_custom_call.1} parent=1 // loop_exit
      _
    %366 = vsyncpa [#allocation4], 1
    %s367 = scalar_lea.sflag [#allocation4], 1
    %368 = vsyncpa %s367, 1

</llo_original>
